<compile_context>
chip_gen: v5e
topology: v5e:2x2
jax: 0.10.0
libtpu: 0.0.40
codegen_flags: <defaults>
</compile_context>

<pallas_src>
import functools
import math

import jax
import jax.numpy as jnp
from jax import lax
from jax.experimental import pallas as pl
from jax.experimental.pallas import tpu as pltpu


def _round_up(n, m):
    return ((n + m - 1) // m) * m


def _single_conv_kernel(x_ref, w_ref, g_ref, b_ref, o_ref, *, wp, q_pad, eps):
    # x_ref: (1, C_in_p, Sp_pad)  zero-padded image, spatially flattened with
    #        row stride wp = W + 2 (lane axis = flattened padded spatial).
    # w_ref: (9, C_out, C_in_p)   conv taps, tap k = 3*dy + dx.
    # g_ref: (C_out, 1)           LayerNorm2d gamma.
    # b_ref: (C_out, 1)           LayerNorm2d beta.
    # o_ref: (1, C_out, q_pad)    fused conv+LN+GELU output on the padded grid.
    c_out = o_ref.shape[1]

    # --- 3x3 conv as 9 accumulated (C_out, C_in) @ (C_in, S) MXU matmuls ---
    acc = jnp.zeros((c_out, q_pad), dtype=jnp.float32)
    for k in range(9):
        dy, dx = k // 3, k % 3
        off = dy * wp + dx                                       # static offset
        xs = x_ref[0, :, pl.ds(off, q_pad)].astype(jnp.float32)  # (C_in_p, S)
        wk = w_ref[k].astype(jnp.float32)                        # (C_out, C_in_p)
        acc = acc + jnp.dot(wk, xs, preferred_element_type=jnp.float32)

    # --- LayerNorm2d over the channel axis (sublanes); matches torch exactly:
    #     biased variance, eps inside sqrt, per-channel affine ---
    mean = jnp.mean(acc, axis=0, keepdims=True)
    xc = acc - mean
    var = jnp.mean(xc * xc, axis=0, keepdims=True)
    inv = lax.rsqrt(var + eps)
    y = xc * inv * g_ref[...].astype(jnp.float32) + b_ref[...].astype(jnp.float32)

    # --- exact GELU: 0.5 * y * (1 + erf(y / sqrt(2))) ---
    # erf via Abramowitz & Stegun 7.1.26 (|err| <= 1.5e-7); only VPU/EUP ops.
    z = y * (1.0 / math.sqrt(2.0))
    az = jnp.abs(z)
    t = 1.0 / (1.0 + 0.3275911 * az)
    poly = ((((1.061405429 * t - 1.453152027) * t + 1.421413741) * t
             - 0.284496736) * t + 0.254829592) * t
    erf_abs = 1.0 - poly * jnp.exp(-az * az)
    erf_z = jnp.where(z < 0.0, -erf_abs, erf_abs)
    gelu = 0.5 * y * (1.0 + erf_z)

    o_ref[0] = gelu.astype(o_ref.dtype)


@functools.partial(jax.jit, static_argnames=("eps",))
def single_conv_forward(x, conv_w, ln_gamma, ln_beta, *, eps=1e-6):
    """Fused Conv2d(3x3, pad=1, bias=False) -> LayerNorm2d -> GELU. NCHW in/out."""
    B, C_in, H, W = x.shape
    C_out, C_in_w, KH, KW = conv_w.shape
    assert C_in_w == C_in and KH == 3 and KW == 3

    wp = W + 2                                    # row stride of the padded image
    q = H * wp                                    # flat output columns we need
    q_pad = _round_up(q, 128)                     # lane-dense output width
    sp_pad = _round_up(q_pad + 2 * wp + 2, 128)   # input width incl. max tap offset
    c_in_p = _round_up(C_in, 8)                   # sublane-align the contraction dim

    # Zero-pad spatially (conv padding=1), flatten spatial, pad flat/channel dims.
    x_pad = jnp.pad(x, ((0, 0), (0, 0), (1, 1), (1, 1)))         # (B, C_in, H+2, W+2)
    x_flat = x_pad.reshape(B, C_in, (H + 2) * wp)
    x_flat = jnp.pad(
        x_flat, ((0, 0), (0, c_in_p - C_in), (0, sp_pad - (H + 2) * wp)))

    # Conv taps as (9, C_out, C_in_p); tap index k = 3*dy + dx.
    w_taps = jnp.transpose(conv_w.reshape(C_out, C_in, 9), (2, 0, 1))
    w_taps = jnp.pad(w_taps, ((0, 0), (0, 0), (0, c_in_p - C_in)))

    gamma = ln_gamma.reshape(C_out, 1)
    beta = ln_beta.reshape(C_out, 1)

    # VMEM budget: double-buffered in/out blocks + params + f32 working set.
    itemsize = x.dtype.itemsize
    in_block = c_in_p * sp_pad * itemsize
    out_block = C_out * q_pad * itemsize
    work = (2 * (in_block + out_block)
            + 3 * C_out * q_pad * 4
            + (9 * C_out * c_in_p + 2 * C_out) * 4)
    if work > 48 * 1024 * 1024:
        # TODO(synk): spatially-tiled variant with halo DMA (pl.ANY +
        # pltpu.make_async_copy) for images whose full padded plane does not fit
        # the per-TensorCore VMEM budget (v7x: 64 MiB).
        raise NotImplementedError("image plane too large for single-block kernel")
    vmem_limit = int(min(max(2 * work + (4 << 20), 16 << 20), 64 << 20))

    kernel = functools.partial(_single_conv_kernel, wp=wp, q_pad=q_pad, eps=float(eps))
    out_flat = pl.pallas_call(
        kernel,
        out_shape=jax.ShapeDtypeStruct((B, C_out, q_pad), x.dtype),
        grid_spec=pltpu.PrefetchScalarGridSpec(
            num_scalar_prefetch=0,
            grid=(B,),
            in_specs=[
                pl.BlockSpec((1, c_in_p, sp_pad), lambda b: (b, 0, 0)),
                pl.BlockSpec((9, C_out, c_in_p), lambda b: (0, 0, 0)),
                pl.BlockSpec((C_out, 1), lambda b: (0, 0)),
                pl.BlockSpec((C_out, 1), lambda b: (0, 0)),
            ],
            out_specs=pl.BlockSpec((1, C_out, q_pad), lambda b: (b, 0, 0)),
        ),
        compiler_params=pltpu.CompilerParams(
            dimension_semantics=("parallel",),
            vmem_limit_bytes=vmem_limit,
        ),
    )(x_flat, w_taps, gamma, beta)

    # Drop the padded-width / tail junk columns (cheap XLA slice, no transpose).
    out = out_flat[:, :, :q].reshape(B, C_out, H, wp)[:, :, :, :W]
    return out


class SingleConv:
    """JAX/Pallas port of SAMUS SingleConv: Conv2d(3x3,pad=1,no bias) -> LayerNorm2d -> GELU."""

    def __init__(self, in_channels, out_channels, kernel_size=3, *, eps=1e-6, key=None):
        if kernel_size != 3:
            # TODO(synk): general odd kernel sizes (SAMUS only uses kernel_size=3).
            raise NotImplementedError("only kernel_size=3 (padding=1) is supported")
        if key is None:
            key = jax.random.PRNGKey(0)
        self.in_channels = in_channels
        self.out_channels = out_channels
        self.eps = float(eps)
        # Conv2d default init: kaiming_uniform(a=sqrt(5)) -> U(-1/sqrt(fan_in), +).
        fan_in = in_channels * kernel_size * kernel_size
        bound = 1.0 / math.sqrt(fan_in)
        self.conv_weight = jax.random.uniform(
            key, (out_channels, in_channels, kernel_size, kernel_size),
            minval=-bound, maxval=bound, dtype=jnp.float32)
        # LayerNorm2d affine parameters (ones / zeros, as in the module).
        self.ln_weight = jnp.ones((out_channels,), jnp.float32)
        self.ln_bias = jnp.zeros((out_channels,), jnp.float32)

    def __call__(self, x):
        return single_conv_forward(x, self.conv_weight, self.ln_weight,
                                   self.ln_bias, eps=self.eps)


def _ref_single_conv(x, conv_w, ln_w, ln_b, eps):
    """Pure-JAX/XLA reference: conv -> LayerNorm2d -> exact GELU."""
    y = lax.conv_general_dilated(
        x, conv_w, window_strides=(1, 1), padding=((1, 1), (1, 1)),
        dimension_numbers=("NCHW", "OIHW", "NCHW"),
        precision=lax.Precision.HIGHEST)
    u = jnp.mean(y, axis=1, keepdims=True)
    s = jnp.mean((y - u) ** 2, axis=1, keepdims=True)
    yn = (y - u) / jnp.sqrt(s + eps)
    yn = ln_w[None, :, None, None] * yn + ln_b[None, :, None, None]
    return jax.nn.gelu(yn, approximate=False)


if __name__ == "__main__":
    key = jax.random.PRNGKey(0)
    k_x, k_w = jax.random.split(key)

    B, C_in, C_out, H, W = 2, 4, 8, 16, 16
    x = jax.random.normal(k_x, (B, C_in, H, W), dtype=jnp.float32)

    mod = SingleConv(C_in, C_out, kernel_size=3, key=k_w)
    y = mod(x)
    y = jax.block_until_ready(y)

    ref = _ref_single_conv(x, mod.conv_weight, mod.ln_weight, mod.ln_bias, mod.eps)
    assert y.shape == (B, C_out, H, W), y.shape
    max_err = float(jnp.max(jnp.abs(y - ref)))
    # f32 accumulation in the kernel; tolerance covers MXU pass rounding + erf approx.
    assert jnp.allclose(y, ref, atol=1e-3, rtol=1e-3), f"max abs err = {max_err}"
    print("KERNEL_OK")
</pallas_src>

<mosaic_0001>
module attributes {stable_mosaic.version = 11 : i64} {
  func.func @_single_conv_kernel(%arg0: i32, %arg1: memref<1x8x512xf32, #tpu.memory_space<vmem>>, %arg2: memref<9x8x8xf32, #tpu.memory_space<vmem>>, %arg3: memref<8x1xf32, #tpu.memory_space<vmem>>, %arg4: memref<8x1xf32, #tpu.memory_space<vmem>>, %arg5: memref<1x8x384xf32, #tpu.memory_space<vmem>>) attributes {dimension_semantics = [#tpu.dimension_semantics<parallel>], iteration_bounds = array<i64: 2>, scalar_prefetch = 0 : i64, scratch_operands = 0 : i64, tpu.core_type = #tpu.core_type<tc>, window_params = [{transform_indices = @transform_0, window_bounds = array<i64: 1, 8, 512>}, {pipeline_mode = #tpu.pipeline_mode<synchronous>, transform_indices = @transform_1, window_bounds = array<i64: 9, 8, 8>}, {pipeline_mode = #tpu.pipeline_mode<synchronous>, transform_indices = @transform_2, window_bounds = array<i64: 8, 1>}, {pipeline_mode = #tpu.pipeline_mode<synchronous>, transform_indices = @transform_3, window_bounds = array<i64: 8, 1>}, {transform_indices = @transform_4, window_bounds = array<i64: 1, 8, 384>}]} {
    %cst = arith.constant 0.000000e+00 : f32
    %0 = vector.broadcast %cst : f32 to vector<8x384xf32>
    %c0 = arith.constant 0 : index
    %c0_0 = arith.constant 0 : index
    %c0_1 = arith.constant 0 : index
    %1 = vector.load %arg1[%c0, %c0_0, %c0_1] : memref<1x8x512xf32, #tpu.memory_space<vmem>>, vector<1x8x384xf32>
    %2 = vector.shape_cast %1 : vector<1x8x384xf32> to vector<8x384xf32>
    %c0_2 = arith.constant 0 : index
    %c0_3 = arith.constant 0 : index
    %c0_4 = arith.constant 0 : index
    %3 = vector.load %arg2[%c0_2, %c0_3, %c0_4] : memref<9x8x8xf32, #tpu.memory_space<vmem>>, vector<1x8x8xf32>
    %4 = vector.shape_cast %3 : vector<1x8x8xf32> to vector<8x8xf32>
    %cst_5 = arith.constant dense<0.000000e+00> : vector<8x384xf32>
    %5 = tpu.matmul %4, %2, %cst_5 {dimension_numbers = #tpu.dot_dimension_numbers<[1], [0], [0], [1], [0, 0, 1, 1], [], []>} : vector<8x8xf32>, vector<8x384xf32>, vector<8x384xf32> -> vector<8x384xf32>
    %6 = arith.addf %0, %5 : vector<8x384xf32>
    %c0_6 = arith.constant 0 : index
    %c0_7 = arith.constant 0 : index
    %c1 = arith.constant 1 : index
    %7 = vector.load %arg1[%c0_6, %c0_7, %c1] : memref<1x8x512xf32, #tpu.memory_space<vmem>>, vector<1x8x384xf32>
    %8 = vector.shape_cast %7 : vector<1x8x384xf32> to vector<8x384xf32>
    %c1_8 = arith.constant 1 : index
    %c0_9 = arith.constant 0 : index
    %c0_10 = arith.constant 0 : index
    %9 = vector.load %arg2[%c1_8, %c0_9, %c0_10] : memref<9x8x8xf32, #tpu.memory_space<vmem>>, vector<1x8x8xf32>
    %10 = vector.shape_cast %9 : vector<1x8x8xf32> to vector<8x8xf32>
    %cst_11 = arith.constant dense<0.000000e+00> : vector<8x384xf32>
    %11 = tpu.matmul %10, %8, %cst_11 {dimension_numbers = #tpu.dot_dimension_numbers<[1], [0], [0], [1], [0, 0, 1, 1], [], []>} : vector<8x8xf32>, vector<8x384xf32>, vector<8x384xf32> -> vector<8x384xf32>
    %12 = arith.addf %6, %11 : vector<8x384xf32>
    %c0_12 = arith.constant 0 : index
    %c0_13 = arith.constant 0 : index
    %c2 = arith.constant 2 : index
    %13 = vector.load %arg1[%c0_12, %c0_13, %c2] : memref<1x8x512xf32, #tpu.memory_space<vmem>>, vector<1x8x384xf32>
    %14 = vector.shape_cast %13 : vector<1x8x384xf32> to vector<8x384xf32>
    %c2_14 = arith.constant 2 : index
    %c0_15 = arith.constant 0 : index
    %c0_16 = arith.constant 0 : index
    %15 = vector.load %arg2[%c2_14, %c0_15, %c0_16] : memref<9x8x8xf32, #tpu.memory_space<vmem>>, vector<1x8x8xf32>
    %16 = vector.shape_cast %15 : vector<1x8x8xf32> to vector<8x8xf32>
    %cst_17 = arith.constant dense<0.000000e+00> : vector<8x384xf32>
    %17 = tpu.matmul %16, %14, %cst_17 {dimension_numbers = #tpu.dot_dimension_numbers<[1], [0], [0], [1], [0, 0, 1, 1], [], []>} : vector<8x8xf32>, vector<8x384xf32>, vector<8x384xf32> -> vector<8x384xf32>
    %18 = arith.addf %12, %17 : vector<8x384xf32>
    %c0_18 = arith.constant 0 : index
    %c0_19 = arith.constant 0 : index
    %c18 = arith.constant 18 : index
    %19 = vector.load %arg1[%c0_18, %c0_19, %c18] : memref<1x8x512xf32, #tpu.memory_space<vmem>>, vector<1x8x384xf32>
    %20 = vector.shape_cast %19 : vector<1x8x384xf32> to vector<8x384xf32>
    %c3 = arith.constant 3 : index
    %c0_20 = arith.constant 0 : index
    %c0_21 = arith.constant 0 : index
    %21 = vector.load %arg2[%c3, %c0_20, %c0_21] : memref<9x8x8xf32, #tpu.memory_space<vmem>>, vector<1x8x8xf32>
    %22 = vector.shape_cast %21 : vector<1x8x8xf32> to vector<8x8xf32>
    %cst_22 = arith.constant dense<0.000000e+00> : vector<8x384xf32>
    %23 = tpu.matmul %22, %20, %cst_22 {dimension_numbers = #tpu.dot_dimension_numbers<[1], [0], [0], [1], [0, 0, 1, 1], [], []>} : vector<8x8xf32>, vector<8x384xf32>, vector<8x384xf32> -> vector<8x384xf32>
    %24 = arith.addf %18, %23 : vector<8x384xf32>
    %c0_23 = arith.constant 0 : index
    %c0_24 = arith.constant 0 : index
    %c19 = arith.constant 19 : index
    %25 = vector.load %arg1[%c0_23, %c0_24, %c19] : memref<1x8x512xf32, #tpu.memory_space<vmem>>, vector<1x8x384xf32>
    %26 = vector.shape_cast %25 : vector<1x8x384xf32> to vector<8x384xf32>
    %c4 = arith.constant 4 : index
    %c0_25 = arith.constant 0 : index
    %c0_26 = arith.constant 0 : index
    %27 = vector.load %arg2[%c4, %c0_25, %c0_26] : memref<9x8x8xf32, #tpu.memory_space<vmem>>, vector<1x8x8xf32>
    %28 = vector.shape_cast %27 : vector<1x8x8xf32> to vector<8x8xf32>
    %cst_27 = arith.constant dense<0.000000e+00> : vector<8x384xf32>
    %29 = tpu.matmul %28, %26, %cst_27 {dimension_numbers = #tpu.dot_dimension_numbers<[1], [0], [0], [1], [0, 0, 1, 1], [], []>} : vector<8x8xf32>, vector<8x384xf32>, vector<8x384xf32> -> vector<8x384xf32>
    %30 = arith.addf %24, %29 : vector<8x384xf32>
    %c0_28 = arith.constant 0 : index
    %c0_29 = arith.constant 0 : index
    %c20 = arith.constant 20 : index
    %31 = vector.load %arg1[%c0_28, %c0_29, %c20] : memref<1x8x512xf32, #tpu.memory_space<vmem>>, vector<1x8x384xf32>
    %32 = vector.shape_cast %31 : vector<1x8x384xf32> to vector<8x384xf32>
    %c5 = arith.constant 5 : index
    %c0_30 = arith.constant 0 : index
    %c0_31 = arith.constant 0 : index
    %33 = vector.load %arg2[%c5, %c0_30, %c0_31] : memref<9x8x8xf32, #tpu.memory_space<vmem>>, vector<1x8x8xf32>
    %34 = vector.shape_cast %33 : vector<1x8x8xf32> to vector<8x8xf32>
    %cst_32 = arith.constant dense<0.000000e+00> : vector<8x384xf32>
    %35 = tpu.matmul %34, %32, %cst_32 {dimension_numbers = #tpu.dot_dimension_numbers<[1], [0], [0], [1], [0, 0, 1, 1], [], []>} : vector<8x8xf32>, vector<8x384xf32>, vector<8x384xf32> -> vector<8x384xf32>
    %36 = arith.addf %30, %35 : vector<8x384xf32>
    %c0_33 = arith.constant 0 : index
    %c0_34 = arith.constant 0 : index
    %c36 = arith.constant 36 : index
    %37 = vector.load %arg1[%c0_33, %c0_34, %c36] : memref<1x8x512xf32, #tpu.memory_space<vmem>>, vector<1x8x384xf32>
    %38 = vector.shape_cast %37 : vector<1x8x384xf32> to vector<8x384xf32>
    %c6 = arith.constant 6 : index
    %c0_35 = arith.constant 0 : index
    %c0_36 = arith.constant 0 : index
    %39 = vector.load %arg2[%c6, %c0_35, %c0_36] : memref<9x8x8xf32, #tpu.memory_space<vmem>>, vector<1x8x8xf32>
    %40 = vector.shape_cast %39 : vector<1x8x8xf32> to vector<8x8xf32>
    %cst_37 = arith.constant dense<0.000000e+00> : vector<8x384xf32>
    %41 = tpu.matmul %40, %38, %cst_37 {dimension_numbers = #tpu.dot_dimension_numbers<[1], [0], [0], [1], [0, 0, 1, 1], [], []>} : vector<8x8xf32>, vector<8x384xf32>, vector<8x384xf32> -> vector<8x384xf32>
    %42 = arith.addf %36, %41 : vector<8x384xf32>
    %c0_38 = arith.constant 0 : index
    %c0_39 = arith.constant 0 : index
    %c37 = arith.constant 37 : index
    %43 = vector.load %arg1[%c0_38, %c0_39, %c37] : memref<1x8x512xf32, #tpu.memory_space<vmem>>, vector<1x8x384xf32>
    %44 = vector.shape_cast %43 : vector<1x8x384xf32> to vector<8x384xf32>
    %c7 = arith.constant 7 : index
    %c0_40 = arith.constant 0 : index
    %c0_41 = arith.constant 0 : index
    %45 = vector.load %arg2[%c7, %c0_40, %c0_41] : memref<9x8x8xf32, #tpu.memory_space<vmem>>, vector<1x8x8xf32>
    %46 = vector.shape_cast %45 : vector<1x8x8xf32> to vector<8x8xf32>
    %cst_42 = arith.constant dense<0.000000e+00> : vector<8x384xf32>
    %47 = tpu.matmul %46, %44, %cst_42 {dimension_numbers = #tpu.dot_dimension_numbers<[1], [0], [0], [1], [0, 0, 1, 1], [], []>} : vector<8x8xf32>, vector<8x384xf32>, vector<8x384xf32> -> vector<8x384xf32>
    %48 = arith.addf %42, %47 : vector<8x384xf32>
    %c0_43 = arith.constant 0 : index
    %c0_44 = arith.constant 0 : index
    %c38 = arith.constant 38 : index
    %49 = vector.load %arg1[%c0_43, %c0_44, %c38] : memref<1x8x512xf32, #tpu.memory_space<vmem>>, vector<1x8x384xf32>
    %50 = vector.shape_cast %49 : vector<1x8x384xf32> to vector<8x384xf32>
    %c8 = arith.constant 8 : index
    %c0_45 = arith.constant 0 : index
    %c0_46 = arith.constant 0 : index
    %51 = vector.load %arg2[%c8, %c0_45, %c0_46] : memref<9x8x8xf32, #tpu.memory_space<vmem>>, vector<1x8x8xf32>
    %52 = vector.shape_cast %51 : vector<1x8x8xf32> to vector<8x8xf32>
    %cst_47 = arith.constant dense<0.000000e+00> : vector<8x384xf32>
    %53 = tpu.matmul %52, %50, %cst_47 {dimension_numbers = #tpu.dot_dimension_numbers<[1], [0], [0], [1], [0, 0, 1, 1], [], []>} : vector<8x8xf32>, vector<8x384xf32>, vector<8x384xf32> -> vector<8x384xf32>
    %54 = arith.addf %48, %53 : vector<8x384xf32>
    %cst_48 = arith.constant dense<0.000000e+00> : vector<384xf32>
    %55 = vector.multi_reduction <add>, %54, %cst_48 [0] : vector<8x384xf32> to vector<384xf32>
    %56 = vector.shape_cast %55 : vector<384xf32> to vector<1x384xf32>
    %cst_49 = arith.constant 8.000000e+00 : f32
    %57 = vector.broadcast %cst_49 : f32 to vector<1x384xf32>
    %58 = arith.divf %56, %57 : vector<1x384xf32>
    %59 = vector.broadcast %58 : vector<1x384xf32> to vector<8x384xf32>
    %60 = arith.subf %54, %59 : vector<8x384xf32>
    %61 = arith.mulf %60, %60 : vector<8x384xf32>
    %cst_50 = arith.constant dense<0.000000e+00> : vector<384xf32>
    %62 = vector.multi_reduction <add>, %61, %cst_50 [0] : vector<8x384xf32> to vector<384xf32>
    %63 = vector.shape_cast %62 : vector<384xf32> to vector<1x384xf32>
    %cst_51 = arith.constant 8.000000e+00 : f32
    %64 = vector.broadcast %cst_51 : f32 to vector<1x384xf32>
    %65 = arith.divf %63, %64 : vector<1x384xf32>
    %cst_52 = arith.constant 9.99999997E-7 : f32
    %66 = vector.broadcast %cst_52 : f32 to vector<1x384xf32>
    %67 = arith.addf %65, %66 : vector<1x384xf32>
    %68 = math.rsqrt %67 : vector<1x384xf32>
    %69 = vector.broadcast %68 : vector<1x384xf32> to vector<8x384xf32>
    %70 = arith.mulf %60, %69 : vector<8x384xf32>
    %c0_53 = arith.constant 0 : index
    %c0_54 = arith.constant 0 : index
    %71 = vector.load %arg3[%c0_53, %c0_54] : memref<8x1xf32, #tpu.memory_space<vmem>>, vector<8x1xf32>
    %72 = vector.broadcast %71 : vector<8x1xf32> to vector<8x384xf32>
    %73 = arith.mulf %70, %72 : vector<8x384xf32>
    %c0_55 = arith.constant 0 : index
    %c0_56 = arith.constant 0 : index
    %74 = vector.load %arg4[%c0_55, %c0_56] : memref<8x1xf32, #tpu.memory_space<vmem>>, vector<8x1xf32>
    %75 = vector.broadcast %74 : vector<8x1xf32> to vector<8x384xf32>
    %76 = arith.addf %73, %75 : vector<8x384xf32>
    %cst_57 = arith.constant 0.707106769 : f32
    %77 = vector.broadcast %cst_57 : f32 to vector<8x384xf32>
    %78 = arith.mulf %76, %77 : vector<8x384xf32>
    %79 = math.absf %78 : vector<8x384xf32>
    %cst_58 = arith.constant 0.327591091 : f32
    %80 = vector.broadcast %cst_58 : f32 to vector<8x384xf32>
    %81 = arith.mulf %80, %79 : vector<8x384xf32>
    %cst_59 = arith.constant 1.000000e+00 : f32
    %82 = vector.broadcast %cst_59 : f32 to vector<8x384xf32>
    %83 = arith.addf %82, %81 : vector<8x384xf32>
    %cst_60 = arith.constant 1.000000e+00 : f32
    %84 = vector.broadcast %cst_60 : f32 to vector<8x384xf32>
    %85 = arith.divf %84, %83 : vector<8x384xf32>
    %cst_61 = arith.constant 1.06140542 : f32
    %86 = vector.broadcast %cst_61 : f32 to vector<8x384xf32>
    %87 = arith.mulf %86, %85 : vector<8x384xf32>
    %cst_62 = arith.constant 1.45315206 : f32
    %88 = vector.broadcast %cst_62 : f32 to vector<8x384xf32>
    %89 = arith.subf %87, %88 : vector<8x384xf32>
    %90 = arith.mulf %89, %85 : vector<8x384xf32>
    %cst_63 = arith.constant 1.42141378 : f32
    %91 = vector.broadcast %cst_63 : f32 to vector<8x384xf32>
    %92 = arith.addf %90, %91 : vector<8x384xf32>
    %93 = arith.mulf %92, %85 : vector<8x384xf32>
    %cst_64 = arith.constant 0.284496725 : f32
    %94 = vector.broadcast %cst_64 : f32 to vector<8x384xf32>
    %95 = arith.subf %93, %94 : vector<8x384xf32>
    %96 = arith.mulf %95, %85 : vector<8x384xf32>
    %cst_65 = arith.constant 0.254829586 : f32
    %97 = vector.broadcast %cst_65 : f32 to vector<8x384xf32>
    %98 = arith.addf %96, %97 : vector<8x384xf32>
    %99 = arith.mulf %98, %85 : vector<8x384xf32>
    %cst_66 = arith.constant 0.000000e+00 : f32
    %100 = vector.broadcast %cst_66 : f32 to vector<8x384xf32>
    %101 = arith.subf %100, %79 : vector<8x384xf32>
    %102 = arith.mulf %101, %79 : vector<8x384xf32>
    %103 = math.exp %102 : vector<8x384xf32>
    %104 = arith.mulf %99, %103 : vector<8x384xf32>
    %cst_67 = arith.constant 1.000000e+00 : f32
    %105 = vector.broadcast %cst_67 : f32 to vector<8x384xf32>
    %106 = arith.subf %105, %104 : vector<8x384xf32>
    %cst_68 = arith.constant 0.000000e+00 : f32
    %107 = vector.broadcast %cst_68 : f32 to vector<8x384xf32>
    %108 = arith.cmpf olt, %78, %107 : vector<8x384xf32>
    %cst_69 = arith.constant 0.000000e+00 : f32
    %109 = vector.broadcast %cst_69 : f32 to vector<8x384xf32>
    %110 = arith.subf %109, %106 : vector<8x384xf32>
    %111 = arith.select %108, %110, %106 : vector<8x384xi1>, vector<8x384xf32>
    %cst_70 = arith.constant 5.000000e-01 : f32
    %112 = vector.broadcast %cst_70 : f32 to vector<8x384xf32>
    %113 = arith.mulf %112, %76 : vector<8x384xf32>
    %cst_71 = arith.constant 1.000000e+00 : f32
    %114 = vector.broadcast %cst_71 : f32 to vector<8x384xf32>
    %115 = arith.addf %114, %111 : vector<8x384xf32>
    %116 = arith.mulf %113, %115 : vector<8x384xf32>
    %c0_72 = arith.constant 0 : index
    %c0_73 = arith.constant 0 : index
    %c0_74 = arith.constant 0 : index
    %117 = vector.load %arg5[%c0_72, %c0_73, %c0_74] : memref<1x8x384xf32, #tpu.memory_space<vmem>>, vector<1x8x384xf32>
    %118 = vector.shape_cast %117 : vector<1x8x384xf32> to vector<8x384xf32>
    %119 = vector.shape_cast %116 : vector<8x384xf32> to vector<1x8x384xf32>
    tpu.vector_store %arg5[%c0_72, %c0_73, %c0_74], %119 {strides = array<i32>} : memref<1x8x384xf32, #tpu.memory_space<vmem>>, vector<1x8x384xf32>,
    return
  }
  func.func @transform_0(%arg0: i32) -> (i32, i32, i32) {
    %c0_i32 = arith.constant 0 : i32
    %c0_i32_0 = arith.constant 0 : i32
    %c0_i32_1 = arith.constant 0 : i32
    return %arg0, %c0_i32, %c0_i32_0 : i32, i32, i32
  }
  func.func @transform_1(%arg0: i32) -> (i32, i32, i32) {
    %c0_i32 = arith.constant 0 : i32
    %c0_i32_0 = arith.constant 0 : i32
    %c0_i32_1 = arith.constant 0 : i32
    %c0_i32_2 = arith.constant 0 : i32
    return %c0_i32, %c0_i32_0, %c0_i32_1 : i32, i32, i32
  }
  func.func @transform_2(%arg0: i32) -> (i32, i32) {
    %c0_i32 = arith.constant 0 : i32
    %c0_i32_0 = arith.constant 0 : i32
    %c0_i32_1 = arith.constant 0 : i32
    return %c0_i32, %c0_i32_0 : i32, i32
  }
  func.func @transform_3(%arg0: i32) -> (i32, i32) {
    %c0_i32 = arith.constant 0 : i32
    %c0_i32_0 = arith.constant 0 : i32
    %c0_i32_1 = arith.constant 0 : i32
    return %c0_i32, %c0_i32_0 : i32, i32
  }
  func.func @transform_4(%arg0: i32) -> (i32, i32, i32) {
    %c0_i32 = arith.constant 0 : i32
    %c0_i32_0 = arith.constant 0 : i32
    %c0_i32_1 = arith.constant 0 : i32
    return %arg0, %c0_i32, %c0_i32_0 : i32, i32, i32
  }
}

</mosaic_0001>

<llo_original>
// kernel: single_conv_forward.1
$region0: #{single_conv_forward.1}
  #allocation0 [shape = 'u32[]', space=smem, size = 0x4, offset = 0x4, fixed_abs, tag = 'smem constant byte address 0x4 - core index']
  #allocation1 [shape = 'u32[72,128]{1,0:T(1,128)}', space=vmem, size = 0x9000, scoped, tag = 'internal scratch']
  %s0 = inlined_call_operand.vmem [shape: f32[2,8,512], index: 0, kind: input, shape index: {}]
  %s1 = inlined_call_operand.vmem [shape: f32[9,8,8], index: 1, kind: input, shape index: {}]
  %s2 = inlined_call_operand.vmem [shape: f32[8,1], index: 2, kind: input, shape index: {}]
  %s3 = inlined_call_operand.vmem [shape: f32[8,1], index: 3, kind: input, shape index: {}]
  %s4 = inlined_call_operand.vmem [shape: f32[2,8,384], index: 4, kind: output, shape index: {}]
  %s5 = sld [smem:[#allocation0]]
  $region49: #{single_conv_forward.1} parent=0
    _
  %s7 = ssub.s32 1, %s5
  %s8 = scalar_select 0, %s7, %s5
  loop: start=0, step=1, limit=4
  $region2: #{single_conv_forward.1} parent=0 // loop_pre_header
    _
  $region3: #{single_conv_forward.1} parent=0 // loop_header
    %s10 = sphi 0, %s14
    %p11 = scmp.ge.s32.totalorder %s10, 4
    %s20 = sphi 0, %s22
    %s23 = sphi 0, %s20
    %s24 = sphi 0, %s23
    %s40 = sphi 0, %s24
    %s44 = sphi 0, %s44
    %s46 = sphi 0, %s44
    %s47 = sphi 0, %s46
    %s61 = sphi 0, %s47
    %s65 = sphi 0, %s65
    %s67 = sphi 0, %s65
    %s68 = sphi 0, %s67
    %s82 = sphi 0, %s68
    %s86 = sphi 0, %s86
    %s88 = sphi 0, %s86
    %s89 = sphi 0, %s88
    %s103 = sphi 0, %s89
    %s109 = sphi 0, %s111
    %s112 = sphi 0, %s109
    %s113 = sphi 0, %s112
    %s129 = sphi 0, %s113
  $region4: #{single_conv_forward.1} parent=0 // loop_header_branch
    %13 = sbr.rel (%p11) target = $region8
  $region5: #{single_conv_forward.1} parent=0 // loop_body
    %s15 = ssub.s32 %s10, 1
    %s16 = ssub.s32 %s10, 2
    %s17 = sadd.s32 %s10, 1
    %s18 = ssub.s32 %s10, %s17
    %p19 = scmp.eq.s32.totalorder %s18, 0
    %s21 = sadd.s32 %s20, 1
    %s22 = scalar_select %p19, %s20, %s21
    %p25 = pneg %p19
    %p26 = scmp.eq.s32.totalorder %s10, 1
    %p27 = por %p25, %p26
    %p28 = scmp.ne.s32.totalorder %s20, %s23
    %p29 = scmp.eq.s32.totalorder %s10, 0
    %p30 = por %p28, %p29
    %p31 = scmp.ne.s32.totalorder %s20, %s23
    %p32 = scmp.eq.s32.totalorder %s15, 1
    %p33 = por %p31, %p32
    %p34 = scmp.ne.s32.totalorder %s23, %s24
    %p35 = scmp.eq.s32.totalorder %s15, 0
    %p36 = por %p34, %p35
    %p37 = scmp.ne.s32.totalorder %s23, %s24
    %p38 = scmp.eq.s32.totalorder %s16, 1
    %p39 = por %p37, %p38
    %p41 = scmp.ne.s32.totalorder %s24, %s40
    %p42 = scmp.eq.s32.totalorder %s16, 0
    %p43 = por %p41, %p42
    %s45 = sadd.s32 %s44, 1
    %p48 = scmp.eq.s32.totalorder %s10, 1
    %p49 = scmp.ne.s32.totalorder %s44, %s46
    %p50 = scmp.eq.s32.totalorder %s10, 0
    %p51 = por %p49, %p50
    %p52 = scmp.ne.s32.totalorder %s44, %s46
    %p53 = scmp.eq.s32.totalorder %s15, 1
    %p54 = por %p52, %p53
    %p55 = scmp.ne.s32.totalorder %s46, %s47
    %p56 = scmp.eq.s32.totalorder %s15, 0
    %p57 = por %p55, %p56
    %p58 = scmp.ne.s32.totalorder %s46, %s47
    %p59 = scmp.eq.s32.totalorder %s16, 1
    %p60 = por %p58, %p59
    %p62 = scmp.ne.s32.totalorder %s47, %s61
    %p63 = scmp.eq.s32.totalorder %s16, 0
    %p64 = por %p62, %p63
    %s66 = sadd.s32 %s65, 1
    %p69 = scmp.eq.s32.totalorder %s10, 1
    %p70 = scmp.ne.s32.totalorder %s65, %s67
    %p71 = scmp.eq.s32.totalorder %s10, 0
    %p72 = por %p70, %p71
    %p73 = scmp.ne.s32.totalorder %s65, %s67
    %p74 = scmp.eq.s32.totalorder %s15, 1
    %p75 = por %p73, %p74
    %p76 = scmp.ne.s32.totalorder %s67, %s68
    %p77 = scmp.eq.s32.totalorder %s15, 0
    %p78 = por %p76, %p77
    %p79 = scmp.ne.s32.totalorder %s67, %s68
    %p80 = scmp.eq.s32.totalorder %s16, 1
    %p81 = por %p79, %p80
    %p83 = scmp.ne.s32.totalorder %s68, %s82
    %p84 = scmp.eq.s32.totalorder %s16, 0
    %p85 = por %p83, %p84
    %s87 = sadd.s32 %s86, 1
    %p90 = scmp.eq.s32.totalorder %s10, 1
    %p91 = scmp.ne.s32.totalorder %s86, %s88
    %p92 = scmp.eq.s32.totalorder %s10, 0
    %p93 = por %p91, %p92
    %p94 = scmp.ne.s32.totalorder %s86, %s88
    %p95 = scmp.eq.s32.totalorder %s15, 1
    %p96 = por %p94, %p95
    %p97 = scmp.ne.s32.totalorder %s88, %s89
    %p98 = scmp.eq.s32.totalorder %s15, 0
    %p99 = por %p97, %p98
    %p100 = scmp.ne.s32.totalorder %s88, %s89
    %p101 = scmp.eq.s32.totalorder %s16, 1
    %p102 = por %p100, %p101
    %p104 = scmp.ne.s32.totalorder %s89, %s103
    %p105 = scmp.eq.s32.totalorder %s16, 0
    %p106 = por %p104, %p105
    %s107 = ssub.s32 %s10, %s17
    %p108 = scmp.eq.s32.totalorder %s107, 0
    %s110 = sadd.s32 %s109, 1
    %s111 = scalar_select %p108, %s109, %s110
    %p114 = pneg %p108
    %p115 = scmp.eq.s32.totalorder %s10, 1
    %p116 = por %p114, %p115
    %p117 = scmp.ne.s32.totalorder %s109, %s112
    %p118 = scmp.eq.s32.totalorder %s10, 0
    %p119 = por %p117, %p118
    %p120 = scmp.ne.s32.totalorder %s109, %s112
    %p121 = scmp.eq.s32.totalorder %s15, 1
    %p122 = por %p120, %p121
    %p123 = scmp.ne.s32.totalorder %s112, %s113
    %p124 = scmp.eq.s32.totalorder %s15, 0
    %p125 = por %p123, %p124
    %p126 = scmp.ne.s32.totalorder %s112, %s113
    %p127 = scmp.eq.s32.totalorder %s16, 1
    %p128 = por %p126, %p127
    %p130 = scmp.ne.s32.totalorder %s113, %s129
    %p131 = scmp.eq.s32.totalorder %s16, 0
    %p132 = por %p130, %p131
    %p133 = scmp.le.s32.totalorder 1, %s10
    %p134 = scmp.lt.s32.totalorder %s10, 3
    %p135 = pnand %p133, %p134
    %p136 = pneg %p135
    // Predicated region
    $region9: #{single_conv_forward.1} parent=5 // pred_check
      _
    $region10: #{single_conv_forward.1} parent=5 // pred_check_branch
      %138 = sbr.rel (%p135) target = $region12
    $region11: #{single_conv_forward.1} parent=5 // pred_region
      %s139 = ssub.s32 %s10, 1
      // Predicated region
      $region13: #{single_conv_forward.1} parent=11 // pred_check
        %p140 = pneg %p57
      $region14: #{single_conv_forward.1} parent=11 // pred_check_branch
        %142 = sbr.rel (%p140) target = $region16
      $region15: #{single_conv_forward.1} parent=11 // pred_region
        _
      $region16: #{single_conv_forward.1} parent=11 // pred_fallthru
        _
      // Predicated region
      $region17: #{single_conv_forward.1} parent=11 // pred_check
        %p143 = pneg %p78
      $region18: #{single_conv_forward.1} parent=11 // pred_check_branch
        %145 = sbr.rel (%p143) target = $region20
      $region19: #{single_conv_forward.1} parent=11 // pred_region
        _
      $region20: #{single_conv_forward.1} parent=11 // pred_fallthru
        _
      // Predicated region
      $region21: #{single_conv_forward.1} parent=11 // pred_check
        %p146 = pneg %p99
      $region22: #{single_conv_forward.1} parent=11 // pred_check_branch
        %148 = sbr.rel (%p146) target = $region24
      $region23: #{single_conv_forward.1} parent=11 // pred_region
        _
      $region24: #{single_conv_forward.1} parent=11 // pred_fallthru
        _
    $region12: #{single_conv_forward.1} parent=5 // pred_fallthru
      _
    %p149 = scmp.lt.s32.totalorder %s10, 2
    // Predicated region
    $region25: #{single_conv_forward.1} parent=5 // pred_check
      %p150 = pneg %p149
    $region26: #{single_conv_forward.1} parent=5 // pred_check_branch
      %152 = sbr.rel (%p150) target = $region28
    $region27: #{single_conv_forward.1} parent=5 // pred_region
      // Predicated region
      $region29: #{single_conv_forward.1} parent=27 // pred_check
        %p153 = pneg %p30
      $region30: #{single_conv_forward.1} parent=27 // pred_check_branch
        %155 = sbr.rel (%p153) target = $region32
      $region31: #{single_conv_forward.1} parent=27 // pred_region
        %p156 = scmp.lt.s32.totalorder %s10, 1
        %s157 = scalar_select %p156, %s10, 1
        %s158 = smul.addr %s157, 4
        %s159 = smul.addr %s158, 8
        %s160 = scalar_lea.vmem %s0, %s159
      $region32: #{single_conv_forward.1} parent=27 // pred_fallthru
        _
    $region28: #{single_conv_forward.1} parent=5 // pred_fallthru
      _
    %p161 = scmp.le.s32.totalorder 1, %s10
    %p162 = scmp.lt.s32.totalorder %s10, 3
    %p163 = pnand %p161, %p162
    %p164 = pneg %p163
    // Predicated region
    $region33: #{single_conv_forward.1} parent=5 // pred_check
      _
    $region34: #{single_conv_forward.1} parent=5 // pred_check_branch
      %166 = sbr.rel (%p163) target = $region36
    $region35: #{single_conv_forward.1} parent=5 // pred_region
      %s167 = ssub.s32 %s10, 1
      %p168 = scmp.lt.s32.totalorder %s15, 1
      %s169 = scalar_select %p168, %s15, 1
      %s170 = smul.addr %s169, 4
      %s171 = smul.addr %s170, 8
      %s172 = scalar_lea.vmem %s0, %s171
      %p173 = pneg %p36
      %p174 = pneg %p33
      %p175 = pneg %p57
      %p176 = pneg %p54
      %p177 = pneg %p78
      %p178 = pneg %p75
      %p179 = pneg %p99
      %p180 = pneg %p96
      %p181 = pneg %p125
      %p182 = pneg %p122
      %p183 = scmp.lt.s32.totalorder %s15, 1
      %s184 = scalar_select %p183, %s15, 1
      %s185 = smul.addr %s184, 3
      %s186 = smul.addr %s185, 8
      %s187 = scalar_lea.vmem %s4, %s186
      %p188 = scmp.lt.s32.totalorder %s15, 1
      %s189 = scalar_select %p188, %s15, 1
      %s190 = smul.addr %s189, 4
      %s191 = smul.addr %s190, 8
      %s192 = scalar_lea.vmem %s0, %s191
      %p193 = scmp.lt.s32.totalorder %s15, 1
      %s194 = scalar_select %p193, %s15, 1
      %s195 = smul.addr %s194, 3
      %s196 = smul.addr %s195, 8
      %s197 = scalar_lea.vmem %s4, %s196
      %v198 = vld [vmem:[%s192] sm:$0xff]
      %v199 = vld [vmem:[%s192 + $0x8] sm:$0xff]
      %v200 = vld [vmem:[%s192 + $0x10] sm:$0xff]
      %v201 = vld [vmem:[%s1] sm:$0xff]
      %v202 = vld [vmem:[%s192] sm:$0xff]
      %v203 = vld [vmem:[%s192 + $0x8] sm:$0xff]
      %v204 = vld [vmem:[%s192 + $0x10] sm:$0xff]
      %v205 = vld [vmem:[%s192 + $0x18] sm:$0xff]
      %s206 = scalar_lea.vmem %s1, 8
      %v207 = vld [vmem:[%s206] sm:$0xff]
      %212 = vrot.lane.b32.xlu0 %v202, 127
      %v213 = vpop.permute.xlu0 %212
      %214 = vrot.lane.b32.xlu0 %v203, 127
      %v215 = vpop.permute.xlu0 %214
      %216 = vrot.lane.b32.xlu0 %v204, 127
      %v217 = vpop.permute.xlu0 %216
      %218 = vrot.lane.b32.xlu0 %v205, 127
      %v219 = vpop.permute.xlu0 %218
      %vm220 = vcmask 1039360
      %v221 = vsel %vm220, %v213, %v215
      %v222 = vsel %vm220, %v215, %v217
      %v223 = vsel %vm220, %v217, %v219
      %vm227 = vcmask 64512
      %v229 = vsel %vm227, %v207, 0
      %231 = vmatpush.msra.mxu0 0.0
      %232 = vmatpush.msra.mxu0 0.0
      %233 = vmatpush.msra.mxu0 0.0
      %234 = vmatpush.msra.mxu0 0.0
      %235 = vmatpush.msra.mxu0 0.0
      %236 = vmatpush.msra.mxu0 0.0
      %237 = vmatpush.msra.mxu0 0.0
      %238 = vmatpush.msra.mxu0 0.0
      %239 = vmatpush.msra.mxu0 0.0
      %240 = vmatpush.msra.mxu0 0.0
      %241 = vmatpush.msra.mxu0 0.0
      %242 = vmatpush.msra.mxu0 0.0
      %243 = vmatpush.msra.mxu0 0.0
      %244 = vmatpush.msra.mxu0 0.0
      %245 = vmatpush.msra.mxu0 0.0
      %246 = vmatpush.msra.mxu0 %v221
      %247 = vmatmul.f32.gmra.mxu0 %v229
      %v248 = vpop.f32.mrf.mxu0
      %v249 = vadd.f32 0.0, %v248
      %250 = vdwg.mxu0
      %251 = vmatpush.msra.mxu0 0.0
      %252 = vmatpush.msra.mxu0 0.0
      %253 = vmatpush.msra.mxu0 0.0
      %254 = vmatpush.msra.mxu0 0.0
      %255 = vmatpush.msra.mxu0 0.0
      %256 = vmatpush.msra.mxu0 0.0
      %257 = vmatpush.msra.mxu0 0.0
      %258 = vmatpush.msra.mxu0 0.0
      %259 = vmatpush.msra.mxu0 0.0
      %260 = vmatpush.msra.mxu0 0.0
      %261 = vmatpush.msra.mxu0 0.0
      %262 = vmatpush.msra.mxu0 0.0
      %263 = vmatpush.msra.mxu0 0.0
      %264 = vmatpush.msra.mxu0 0.0
      %265 = vmatpush.msra.mxu0 0.0
      %266 = vmatpush.msra.mxu0 %v222
      %267 = vmatmul.f32.gmra.mxu0 %v229
      %v268 = vpop.f32.mrf.mxu0
      %v269 = vadd.f32 0.0, %v268
      %270 = vdwg.mxu0
      %271 = vmatpush.msra.mxu0 0.0
      %272 = vmatpush.msra.mxu0 0.0
      %273 = vmatpush.msra.mxu0 0.0
      %274 = vmatpush.msra.mxu0 0.0
      %275 = vmatpush.msra.mxu0 0.0
      %276 = vmatpush.msra.mxu0 0.0
      %277 = vmatpush.msra.mxu0 0.0
      %278 = vmatpush.msra.mxu0 0.0
      %279 = vmatpush.msra.mxu0 0.0
      %280 = vmatpush.msra.mxu0 0.0
      %281 = vmatpush.msra.mxu0 0.0
      %282 = vmatpush.msra.mxu0 0.0
      %283 = vmatpush.msra.mxu0 0.0
      %284 = vmatpush.msra.mxu0 0.0
      %285 = vmatpush.msra.mxu0 0.0
      %286 = vmatpush.msra.mxu0 %v223
      %287 = vmatmul.f32.gmra.mxu0 %v229
      %v288 = vpop.f32.mrf.mxu0
      %v289 = vadd.f32 0.0, %v288
      %290 = vdwg.mxu0
      %v292 = vsel %vm227, %v201, 0
      %294 = vmatpush.msra.mxu0 0.0
      %295 = vmatpush.msra.mxu0 0.0
      %296 = vmatpush.msra.mxu0 0.0
      %297 = vmatpush.msra.mxu0 0.0
      %298 = vmatpush.msra.mxu0 0.0
      %299 = vmatpush.msra.mxu0 0.0
      %300 = vmatpush.msra.mxu0 0.0
      %301 = vmatpush.msra.mxu0 0.0
      %302 = vmatpush.msra.mxu0 0.0
      %303 = vmatpush.msra.mxu0 0.0
      %304 = vmatpush.msra.mxu0 0.0
      %305 = vmatpush.msra.mxu0 0.0
      %306 = vmatpush.msra.mxu0 0.0
      %307 = vmatpush.msra.mxu0 0.0
      %308 = vmatpush.msra.mxu0 0.0
      %309 = vmatpush.msra.mxu0 %v198
      %310 = vmatmul.f32.gmra.mxu0 %v292
      %v311 = vpop.f32.mrf.mxu0
      %v312 = vadd.f32 %v249, %v311
      %313 = vdwg.mxu0
      %314 = vmatpush.msra.mxu0 0.0
      %315 = vmatpush.msra.mxu0 0.0
      %316 = vmatpush.msra.mxu0 0.0
      %317 = vmatpush.msra.mxu0 0.0
      %318 = vmatpush.msra.mxu0 0.0
      %319 = vmatpush.msra.mxu0 0.0
      %320 = vmatpush.msra.mxu0 0.0
      %321 = vmatpush.msra.mxu0 0.0
      %322 = vmatpush.msra.mxu0 0.0
      %323 = vmatpush.msra.mxu0 0.0
      %324 = vmatpush.msra.mxu0 0.0
      %325 = vmatpush.msra.mxu0 0.0
      %326 = vmatpush.msra.mxu0 0.0
      %327 = vmatpush.msra.mxu0 0.0
      %328 = vmatpush.msra.mxu0 0.0
      %329 = vmatpush.msra.mxu0 %v199
      %330 = vmatmul.f32.gmra.mxu0 %v292
      %v331 = vpop.f32.mrf.mxu0
      %v332 = vadd.f32 %v269, %v331
      %333 = vdwg.mxu0
      %334 = vmatpush.msra.mxu0 0.0
      %335 = vmatpush.msra.mxu0 0.0
      %336 = vmatpush.msra.mxu0 0.0
      %337 = vmatpush.msra.mxu0 0.0
      %338 = vmatpush.msra.mxu0 0.0
      %339 = vmatpush.msra.mxu0 0.0
      %340 = vmatpush.msra.mxu0 0.0
      %341 = vmatpush.msra.mxu0 0.0
      %342 = vmatpush.msra.mxu0 0.0
      %343 = vmatpush.msra.mxu0 0.0
      %344 = vmatpush.msra.mxu0 0.0
      %345 = vmatpush.msra.mxu0 0.0
      %346 = vmatpush.msra.mxu0 0.0
      %347 = vmatpush.msra.mxu0 0.0
      %348 = vmatpush.msra.mxu0 0.0
      %349 = vmatpush.msra.mxu0 %v200
      %350 = vmatmul.f32.gmra.mxu0 %v292
      %v351 = vpop.f32.mrf.mxu0
      %v352 = vadd.f32 %v289, %v351
      %353 = vdwg.mxu0
      %s354 = scalar_lea.vmem %s1, 16
      %v355 = vld [vmem:[%s354] sm:$0xff]
      %356 = vrot.lane.b32.xlu0 %v202, 126
      %v357 = vpop.permute.xlu0 %356
      %358 = vrot.lane.b32.xlu0 %v203, 126
      %v359 = vpop.permute.xlu0 %358
      %360 = vrot.lane.b32.xlu0 %v204, 126
      %v361 = vpop.permute.xlu0 %360
      %362 = vrot.lane.b32.xlu0 %v205, 126
      %v363 = vpop.permute.xlu0 %362
      %vm364 = vcmask 1031168
      %v365 = vsel %vm364, %v357, %v359
      %v366 = vsel %vm364, %v359, %v361
      %v367 = vsel %vm364, %v361, %v363
      %v372 = vsel %vm227, %v355, 0
      %374 = vmatpush.msra.mxu0 0.0
      %375 = vmatpush.msra.mxu0 0.0
      %376 = vmatpush.msra.mxu0 0.0
      %377 = vmatpush.msra.mxu0 0.0
      %378 = vmatpush.msra.mxu0 0.0
      %379 = vmatpush.msra.mxu0 0.0
      %380 = vmatpush.msra.mxu0 0.0
      %381 = vmatpush.msra.mxu0 0.0
      %382 = vmatpush.msra.mxu0 0.0
      %383 = vmatpush.msra.mxu0 0.0
      %384 = vmatpush.msra.mxu0 0.0
      %385 = vmatpush.msra.mxu0 0.0
      %386 = vmatpush.msra.mxu0 0.0
      %387 = vmatpush.msra.mxu0 0.0
      %388 = vmatpush.msra.mxu0 0.0
      %389 = vmatpush.msra.mxu0 %v365
      %390 = vmatmul.f32.gmra.mxu0 %v372
      %v391 = vpop.f32.mrf.mxu0
      %v392 = vadd.f32 0.0, %v391
      %393 = vdwg.mxu0
      %394 = vmatpush.msra.mxu0 0.0
      %395 = vmatpush.msra.mxu0 0.0
      %396 = vmatpush.msra.mxu0 0.0
      %397 = vmatpush.msra.mxu0 0.0
      %398 = vmatpush.msra.mxu0 0.0
      %399 = vmatpush.msra.mxu0 0.0
      %400 = vmatpush.msra.mxu0 0.0
      %401 = vmatpush.msra.mxu0 0.0
      %402 = vmatpush.msra.mxu0 0.0
      %403 = vmatpush.msra.mxu0 0.0
      %404 = vmatpush.msra.mxu0 0.0
      %405 = vmatpush.msra.mxu0 0.0
      %406 = vmatpush.msra.mxu0 0.0
      %407 = vmatpush.msra.mxu0 0.0
      %408 = vmatpush.msra.mxu0 0.0
      %409 = vmatpush.msra.mxu0 %v366
      %410 = vmatmul.f32.gmra.mxu0 %v372
      %v411 = vpop.f32.mrf.mxu0
      %v412 = vadd.f32 0.0, %v411
      %413 = vdwg.mxu0
      %414 = vmatpush.msra.mxu0 0.0
      %415 = vmatpush.msra.mxu0 0.0
      %416 = vmatpush.msra.mxu0 0.0
      %417 = vmatpush.msra.mxu0 0.0
      %418 = vmatpush.msra.mxu0 0.0
      %419 = vmatpush.msra.mxu0 0.0
      %420 = vmatpush.msra.mxu0 0.0
      %421 = vmatpush.msra.mxu0 0.0
      %422 = vmatpush.msra.mxu0 0.0
      %423 = vmatpush.msra.mxu0 0.0
      %424 = vmatpush.msra.mxu0 0.0
      %425 = vmatpush.msra.mxu0 0.0
      %426 = vmatpush.msra.mxu0 0.0
      %427 = vmatpush.msra.mxu0 0.0
      %428 = vmatpush.msra.mxu0 0.0
      %429 = vmatpush.msra.mxu0 %v367
      %430 = vmatmul.f32.gmra.mxu0 %v372
      %v431 = vpop.f32.mrf.mxu0
      %v432 = vadd.f32 0.0, %v431
      %433 = vdwg.mxu0
      %v434 = vadd.f32 %v312, %v392
      %v435 = vadd.f32 %v332, %v412
      %v436 = vadd.f32 %v352, %v432
      %s437 = scalar_lea.vmem %s1, 24
      %v438 = vld [vmem:[%s437] sm:$0xff]
      %439 = vrot.lane.b32.xlu0 %v202, 110
      %v440 = vpop.permute.xlu0 %439
      %441 = vrot.lane.b32.xlu0 %v203, 110
      %v442 = vpop.permute.xlu0 %441
      %443 = vrot.lane.b32.xlu0 %v204, 110
      %v444 = vpop.permute.xlu0 %443
      %445 = vrot.lane.b32.xlu0 %v205, 110
      %v446 = vpop.permute.xlu0 %445
      %vm447 = vcmask 900096
      %v448 = vsel %vm447, %v440, %v442
      %v449 = vsel %vm447, %v442, %v444
      %v450 = vsel %vm447, %v444, %v446
      %v455 = vsel %vm227, %v438, 0
      %457 = vmatpush.msra.mxu0 0.0
      %458 = vmatpush.msra.mxu0 0.0
      %459 = vmatpush.msra.mxu0 0.0
      %460 = vmatpush.msra.mxu0 0.0
      %461 = vmatpush.msra.mxu0 0.0
      %462 = vmatpush.msra.mxu0 0.0
      %463 = vmatpush.msra.mxu0 0.0
      %464 = vmatpush.msra.mxu0 0.0
      %465 = vmatpush.msra.mxu0 0.0
      %466 = vmatpush.msra.mxu0 0.0
      %467 = vmatpush.msra.mxu0 0.0
      %468 = vmatpush.msra.mxu0 0.0
      %469 = vmatpush.msra.mxu0 0.0
      %470 = vmatpush.msra.mxu0 0.0
      %471 = vmatpush.msra.mxu0 0.0
      %472 = vmatpush.msra.mxu0 %v448
      %473 = vmatmul.f32.gmra.mxu0 %v455
      %v474 = vpop.f32.mrf.mxu0
      %v475 = vadd.f32 0.0, %v474
      %476 = vdwg.mxu0
      %477 = vmatpush.msra.mxu0 0.0
      %478 = vmatpush.msra.mxu0 0.0
      %479 = vmatpush.msra.mxu0 0.0
      %480 = vmatpush.msra.mxu0 0.0
      %481 = vmatpush.msra.mxu0 0.0
      %482 = vmatpush.msra.mxu0 0.0
      %483 = vmatpush.msra.mxu0 0.0
      %484 = vmatpush.msra.mxu0 0.0
      %485 = vmatpush.msra.mxu0 0.0
      %486 = vmatpush.msra.mxu0 0.0
      %487 = vmatpush.msra.mxu0 0.0
      %488 = vmatpush.msra.mxu0 0.0
      %489 = vmatpush.msra.mxu0 0.0
      %490 = vmatpush.msra.mxu0 0.0
      %491 = vmatpush.msra.mxu0 0.0
      %492 = vmatpush.msra.mxu0 %v449
      %493 = vmatmul.f32.gmra.mxu0 %v455
      %v494 = vpop.f32.mrf.mxu0
      %v495 = vadd.f32 0.0, %v494
      %496 = vdwg.mxu0
      %497 = vmatpush.msra.mxu0 0.0
      %498 = vmatpush.msra.mxu0 0.0
      %499 = vmatpush.msra.mxu0 0.0
      %500 = vmatpush.msra.mxu0 0.0
      %501 = vmatpush.msra.mxu0 0.0
      %502 = vmatpush.msra.mxu0 0.0
      %503 = vmatpush.msra.mxu0 0.0
      %504 = vmatpush.msra.mxu0 0.0
      %505 = vmatpush.msra.mxu0 0.0
      %506 = vmatpush.msra.mxu0 0.0
      %507 = vmatpush.msra.mxu0 0.0
      %508 = vmatpush.msra.mxu0 0.0
      %509 = vmatpush.msra.mxu0 0.0
      %510 = vmatpush.msra.mxu0 0.0
      %511 = vmatpush.msra.mxu0 0.0
      %512 = vmatpush.msra.mxu0 %v450
      %513 = vmatmul.f32.gmra.mxu0 %v455
      %v514 = vpop.f32.mrf.mxu0
      %v515 = vadd.f32 0.0, %v514
      %516 = vdwg.mxu0
      %v517 = vadd.f32 %v434, %v475
      %v518 = vadd.f32 %v435, %v495
      %v519 = vadd.f32 %v436, %v515
      %s520 = scalar_lea.vmem %s1, 32
      %v521 = vld [vmem:[%s520] sm:$0xff]
      %522 = vrot.lane.b32.xlu0 %v202, 109
      %v523 = vpop.permute.xlu0 %522
      %524 = vrot.lane.b32.xlu0 %v203, 109
      %v525 = vpop.permute.xlu0 %524
      %526 = vrot.lane.b32.xlu0 %v204, 109
      %v527 = vpop.permute.xlu0 %526
      %528 = vrot.lane.b32.xlu0 %v205, 109
      %v529 = vpop.permute.xlu0 %528
      %vm530 = vcmask 891904
      %v531 = vsel %vm530, %v523, %v525
      %v532 = vsel %vm530, %v525, %v527
      %v533 = vsel %vm530, %v527, %v529
      %v538 = vsel %vm227, %v521, 0
      %540 = vmatpush.msra.mxu0 0.0
      %541 = vmatpush.msra.mxu0 0.0
      %542 = vmatpush.msra.mxu0 0.0
      %543 = vmatpush.msra.mxu0 0.0
      %544 = vmatpush.msra.mxu0 0.0
      %545 = vmatpush.msra.mxu0 0.0
      %546 = vmatpush.msra.mxu0 0.0
      %547 = vmatpush.msra.mxu0 0.0
      %548 = vmatpush.msra.mxu0 0.0
      %549 = vmatpush.msra.mxu0 0.0
      %550 = vmatpush.msra.mxu0 0.0
      %551 = vmatpush.msra.mxu0 0.0
      %552 = vmatpush.msra.mxu0 0.0
      %553 = vmatpush.msra.mxu0 0.0
      %554 = vmatpush.msra.mxu0 0.0
      %555 = vmatpush.msra.mxu0 %v531
      %556 = vmatmul.f32.gmra.mxu0 %v538
      %v557 = vpop.f32.mrf.mxu0
      %v558 = vadd.f32 0.0, %v557
      %559 = vdwg.mxu0
      %560 = vmatpush.msra.mxu0 0.0
      %561 = vmatpush.msra.mxu0 0.0
      %562 = vmatpush.msra.mxu0 0.0
      %563 = vmatpush.msra.mxu0 0.0
      %564 = vmatpush.msra.mxu0 0.0
      %565 = vmatpush.msra.mxu0 0.0
      %566 = vmatpush.msra.mxu0 0.0
      %567 = vmatpush.msra.mxu0 0.0
      %568 = vmatpush.msra.mxu0 0.0
      %569 = vmatpush.msra.mxu0 0.0
      %570 = vmatpush.msra.mxu0 0.0
      %571 = vmatpush.msra.mxu0 0.0
      %572 = vmatpush.msra.mxu0 0.0
      %573 = vmatpush.msra.mxu0 0.0
      %574 = vmatpush.msra.mxu0 0.0
      %575 = vmatpush.msra.mxu0 %v532
      %576 = vmatmul.f32.gmra.mxu0 %v538
      %v577 = vpop.f32.mrf.mxu0
      %v578 = vadd.f32 0.0, %v577
      %579 = vdwg.mxu0
      %580 = vmatpush.msra.mxu0 0.0
      %581 = vmatpush.msra.mxu0 0.0
      %582 = vmatpush.msra.mxu0 0.0
      %583 = vmatpush.msra.mxu0 0.0
      %584 = vmatpush.msra.mxu0 0.0
      %585 = vmatpush.msra.mxu0 0.0
      %586 = vmatpush.msra.mxu0 0.0
      %587 = vmatpush.msra.mxu0 0.0
      %588 = vmatpush.msra.mxu0 0.0
      %589 = vmatpush.msra.mxu0 0.0
      %590 = vmatpush.msra.mxu0 0.0
      %591 = vmatpush.msra.mxu0 0.0
      %592 = vmatpush.msra.mxu0 0.0
      %593 = vmatpush.msra.mxu0 0.0
      %594 = vmatpush.msra.mxu0 0.0
      %595 = vmatpush.msra.mxu0 %v533
      %596 = vmatmul.f32.gmra.mxu0 %v538
      %v597 = vpop.f32.mrf.mxu0
      %v598 = vadd.f32 0.0, %v597
      %599 = vdwg.mxu0
      %v600 = vadd.f32 %v517, %v558
      %v601 = vadd.f32 %v518, %v578
      %v602 = vadd.f32 %v519, %v598
      %s603 = scalar_lea.vmem %s1, 40
      %v604 = vld [vmem:[%s603] sm:$0xff]
      %605 = vrot.lane.b32.xlu0 %v202, 108
      %v606 = vpop.permute.xlu0 %605
      %607 = vrot.lane.b32.xlu0 %v203, 108
      %v608 = vpop.permute.xlu0 %607
      %609 = vrot.lane.b32.xlu0 %v204, 108
      %v610 = vpop.permute.xlu0 %609
      %611 = vrot.lane.b32.xlu0 %v205, 108
      %v612 = vpop.permute.xlu0 %611
      %vm613 = vcmask 883712
      %v614 = vsel %vm613, %v606, %v608
      %v615 = vsel %vm613, %v608, %v610
      %v616 = vsel %vm613, %v610, %v612
      %v621 = vsel %vm227, %v604, 0
      %623 = vmatpush.msra.mxu0 0.0
      %624 = vmatpush.msra.mxu0 0.0
      %625 = vmatpush.msra.mxu0 0.0
      %626 = vmatpush.msra.mxu0 0.0
      %627 = vmatpush.msra.mxu0 0.0
      %628 = vmatpush.msra.mxu0 0.0
      %629 = vmatpush.msra.mxu0 0.0
      %630 = vmatpush.msra.mxu0 0.0
      %631 = vmatpush.msra.mxu0 0.0
      %632 = vmatpush.msra.mxu0 0.0
      %633 = vmatpush.msra.mxu0 0.0
      %634 = vmatpush.msra.mxu0 0.0
      %635 = vmatpush.msra.mxu0 0.0
      %636 = vmatpush.msra.mxu0 0.0
      %637 = vmatpush.msra.mxu0 0.0
      %638 = vmatpush.msra.mxu0 %v614
      %639 = vmatmul.f32.gmra.mxu0 %v621
      %v640 = vpop.f32.mrf.mxu0
      %v641 = vadd.f32 0.0, %v640
      %642 = vdwg.mxu0
      %643 = vmatpush.msra.mxu0 0.0
      %644 = vmatpush.msra.mxu0 0.0
      %645 = vmatpush.msra.mxu0 0.0
      %646 = vmatpush.msra.mxu0 0.0
      %647 = vmatpush.msra.mxu0 0.0
      %648 = vmatpush.msra.mxu0 0.0
      %649 = vmatpush.msra.mxu0 0.0
      %650 = vmatpush.msra.mxu0 0.0
      %651 = vmatpush.msra.mxu0 0.0
      %652 = vmatpush.msra.mxu0 0.0
      %653 = vmatpush.msra.mxu0 0.0
      %654 = vmatpush.msra.mxu0 0.0
      %655 = vmatpush.msra.mxu0 0.0
      %656 = vmatpush.msra.mxu0 0.0
      %657 = vmatpush.msra.mxu0 0.0
      %658 = vmatpush.msra.mxu0 %v615
      %659 = vmatmul.f32.gmra.mxu0 %v621
      %v660 = vpop.f32.mrf.mxu0
      %v661 = vadd.f32 0.0, %v660
      %662 = vdwg.mxu0
      %663 = vmatpush.msra.mxu0 0.0
      %664 = vmatpush.msra.mxu0 0.0
      %665 = vmatpush.msra.mxu0 0.0
      %666 = vmatpush.msra.mxu0 0.0
      %667 = vmatpush.msra.mxu0 0.0
      %668 = vmatpush.msra.mxu0 0.0
      %669 = vmatpush.msra.mxu0 0.0
      %670 = vmatpush.msra.mxu0 0.0
      %671 = vmatpush.msra.mxu0 0.0
      %672 = vmatpush.msra.mxu0 0.0
      %673 = vmatpush.msra.mxu0 0.0
      %674 = vmatpush.msra.mxu0 0.0
      %675 = vmatpush.msra.mxu0 0.0
      %676 = vmatpush.msra.mxu0 0.0
      %677 = vmatpush.msra.mxu0 0.0
      %678 = vmatpush.msra.mxu0 %v616
      %679 = vmatmul.f32.gmra.mxu0 %v621
      %v680 = vpop.f32.mrf.mxu0
      %v681 = vadd.f32 0.0, %v680
      %682 = vdwg.mxu0
      %v683 = vadd.f32 %v600, %v641
      %v684 = vadd.f32 %v601, %v661
      %v685 = vadd.f32 %v602, %v681
      %s686 = scalar_lea.vmem %s1, 48
      %v687 = vld [vmem:[%s686] sm:$0xff]
      %688 = vrot.lane.b32.xlu0 %v202, 92
      %v689 = vpop.permute.xlu0 %688
      %690 = vrot.lane.b32.xlu0 %v203, 92
      %v691 = vpop.permute.xlu0 %690
      %692 = vrot.lane.b32.xlu0 %v204, 92
      %v693 = vpop.permute.xlu0 %692
      %694 = vrot.lane.b32.xlu0 %v205, 92
      %v695 = vpop.permute.xlu0 %694
      %vm696 = vcmask 752640
      %v697 = vsel %vm696, %v689, %v691
      %v698 = vsel %vm696, %v691, %v693
      %v699 = vsel %vm696, %v693, %v695
      %v704 = vsel %vm227, %v687, 0
      %706 = vmatpush.msra.mxu0 0.0
      %707 = vmatpush.msra.mxu0 0.0
      %708 = vmatpush.msra.mxu0 0.0
      %709 = vmatpush.msra.mxu0 0.0
      %710 = vmatpush.msra.mxu0 0.0
      %711 = vmatpush.msra.mxu0 0.0
      %712 = vmatpush.msra.mxu0 0.0
      %713 = vmatpush.msra.mxu0 0.0
      %714 = vmatpush.msra.mxu0 0.0
      %715 = vmatpush.msra.mxu0 0.0
      %716 = vmatpush.msra.mxu0 0.0
      %717 = vmatpush.msra.mxu0 0.0
      %718 = vmatpush.msra.mxu0 0.0
      %719 = vmatpush.msra.mxu0 0.0
      %720 = vmatpush.msra.mxu0 0.0
      %721 = vmatpush.msra.mxu0 %v697
      %722 = vmatmul.f32.gmra.mxu0 %v704
      %v723 = vpop.f32.mrf.mxu0
      %v724 = vadd.f32 0.0, %v723
      %725 = vdwg.mxu0
      %726 = vmatpush.msra.mxu0 0.0
      %727 = vmatpush.msra.mxu0 0.0
      %728 = vmatpush.msra.mxu0 0.0
      %729 = vmatpush.msra.mxu0 0.0
      %730 = vmatpush.msra.mxu0 0.0
      %731 = vmatpush.msra.mxu0 0.0
      %732 = vmatpush.msra.mxu0 0.0
      %733 = vmatpush.msra.mxu0 0.0
      %734 = vmatpush.msra.mxu0 0.0
      %735 = vmatpush.msra.mxu0 0.0
      %736 = vmatpush.msra.mxu0 0.0
      %737 = vmatpush.msra.mxu0 0.0
      %738 = vmatpush.msra.mxu0 0.0
      %739 = vmatpush.msra.mxu0 0.0
      %740 = vmatpush.msra.mxu0 0.0
      %741 = vmatpush.msra.mxu0 %v698
      %742 = vmatmul.f32.gmra.mxu0 %v704
      %v743 = vpop.f32.mrf.mxu0
      %v744 = vadd.f32 0.0, %v743
      %745 = vdwg.mxu0
      %746 = vmatpush.msra.mxu0 0.0
      %747 = vmatpush.msra.mxu0 0.0
      %748 = vmatpush.msra.mxu0 0.0
      %749 = vmatpush.msra.mxu0 0.0
      %750 = vmatpush.msra.mxu0 0.0
      %751 = vmatpush.msra.mxu0 0.0
      %752 = vmatpush.msra.mxu0 0.0
      %753 = vmatpush.msra.mxu0 0.0
      %754 = vmatpush.msra.mxu0 0.0
      %755 = vmatpush.msra.mxu0 0.0
      %756 = vmatpush.msra.mxu0 0.0
      %757 = vmatpush.msra.mxu0 0.0
      %758 = vmatpush.msra.mxu0 0.0
      %759 = vmatpush.msra.mxu0 0.0
      %760 = vmatpush.msra.mxu0 0.0
      %761 = vmatpush.msra.mxu0 %v699
      %762 = vmatmul.f32.gmra.mxu0 %v704
      %v763 = vpop.f32.mrf.mxu0
      %v764 = vadd.f32 0.0, %v763
      %765 = vdwg.mxu0
      %v766 = vadd.f32 %v683, %v724
      %v767 = vadd.f32 %v684, %v744
      %v768 = vadd.f32 %v685, %v764
      %s769 = scalar_lea.vmem %s1, 56
      %v770 = vld [vmem:[%s769] sm:$0xff]
      %771 = vrot.lane.b32.xlu0 %v202, 91
      %v772 = vpop.permute.xlu0 %771
      %773 = vrot.lane.b32.xlu0 %v203, 91
      %v774 = vpop.permute.xlu0 %773
      %775 = vrot.lane.b32.xlu0 %v204, 91
      %v776 = vpop.permute.xlu0 %775
      %777 = vrot.lane.b32.xlu0 %v205, 91
      %v778 = vpop.permute.xlu0 %777
      %vm779 = vcmask 744448
      %v780 = vsel %vm779, %v772, %v774
      %v781 = vsel %vm779, %v774, %v776
      %v782 = vsel %vm779, %v776, %v778
      %v787 = vsel %vm227, %v770, 0
      %789 = vmatpush.msra.mxu0 0.0
      %790 = vmatpush.msra.mxu0 0.0
      %791 = vmatpush.msra.mxu0 0.0
      %792 = vmatpush.msra.mxu0 0.0
      %793 = vmatpush.msra.mxu0 0.0
      %794 = vmatpush.msra.mxu0 0.0
      %795 = vmatpush.msra.mxu0 0.0
      %796 = vmatpush.msra.mxu0 0.0
      %797 = vmatpush.msra.mxu0 0.0
      %798 = vmatpush.msra.mxu0 0.0
      %799 = vmatpush.msra.mxu0 0.0
      %800 = vmatpush.msra.mxu0 0.0
      %801 = vmatpush.msra.mxu0 0.0
      %802 = vmatpush.msra.mxu0 0.0
      %803 = vmatpush.msra.mxu0 0.0
      %804 = vmatpush.msra.mxu0 %v780
      %805 = vmatmul.f32.gmra.mxu0 %v787
      %v806 = vpop.f32.mrf.mxu0
      %v807 = vadd.f32 0.0, %v806
      %808 = vdwg.mxu0
      %809 = vmatpush.msra.mxu0 0.0
      %810 = vmatpush.msra.mxu0 0.0
      %811 = vmatpush.msra.mxu0 0.0
      %812 = vmatpush.msra.mxu0 0.0
      %813 = vmatpush.msra.mxu0 0.0
      %814 = vmatpush.msra.mxu0 0.0
      %815 = vmatpush.msra.mxu0 0.0
      %816 = vmatpush.msra.mxu0 0.0
      %817 = vmatpush.msra.mxu0 0.0
      %818 = vmatpush.msra.mxu0 0.0
      %819 = vmatpush.msra.mxu0 0.0
      %820 = vmatpush.msra.mxu0 0.0
      %821 = vmatpush.msra.mxu0 0.0
      %822 = vmatpush.msra.mxu0 0.0
      %823 = vmatpush.msra.mxu0 0.0
      %824 = vmatpush.msra.mxu0 %v781
      %825 = vmatmul.f32.gmra.mxu0 %v787
      %v826 = vpop.f32.mrf.mxu0
      %v827 = vadd.f32 0.0, %v826
      %828 = vdwg.mxu0
      %829 = vmatpush.msra.mxu0 0.0
      %830 = vmatpush.msra.mxu0 0.0
      %831 = vmatpush.msra.mxu0 0.0
      %832 = vmatpush.msra.mxu0 0.0
      %833 = vmatpush.msra.mxu0 0.0
      %834 = vmatpush.msra.mxu0 0.0
      %835 = vmatpush.msra.mxu0 0.0
      %836 = vmatpush.msra.mxu0 0.0
      %837 = vmatpush.msra.mxu0 0.0
      %838 = vmatpush.msra.mxu0 0.0
      %839 = vmatpush.msra.mxu0 0.0
      %840 = vmatpush.msra.mxu0 0.0
      %841 = vmatpush.msra.mxu0 0.0
      %842 = vmatpush.msra.mxu0 0.0
      %843 = vmatpush.msra.mxu0 0.0
      %844 = vmatpush.msra.mxu0 %v782
      %845 = vmatmul.f32.gmra.mxu0 %v787
      %v846 = vpop.f32.mrf.mxu0
      %v847 = vadd.f32 0.0, %v846
      %848 = vdwg.mxu0
      %v849 = vadd.f32 %v766, %v807
      %v850 = vadd.f32 %v767, %v827
      %v851 = vadd.f32 %v768, %v847
      %s852 = scalar_lea.vmem %s1, 64
      %v853 = vld [vmem:[%s852] sm:$0xff]
      %854 = vrot.lane.b32.xlu0 %v202, 90
      %v855 = vpop.permute.xlu0 %854
      %856 = vrot.lane.b32.xlu0 %v203, 90
      %v857 = vpop.permute.xlu0 %856
      %858 = vrot.lane.b32.xlu0 %v204, 90
      %v859 = vpop.permute.xlu0 %858
      %860 = vrot.lane.b32.xlu0 %v205, 90
      %v861 = vpop.permute.xlu0 %860
      %vm862 = vcmask 736256
      %v863 = vsel %vm862, %v855, %v857
      %v864 = vsel %vm862, %v857, %v859
      %v865 = vsel %vm862, %v859, %v861
      %v870 = vsel %vm227, %v853, 0
      %872 = vmatpush.msra.mxu0 0.0
      %873 = vmatpush.msra.mxu0 0.0
      %874 = vmatpush.msra.mxu0 0.0
      %875 = vmatpush.msra.mxu0 0.0
      %876 = vmatpush.msra.mxu0 0.0
      %877 = vmatpush.msra.mxu0 0.0
      %878 = vmatpush.msra.mxu0 0.0
      %879 = vmatpush.msra.mxu0 0.0
      %880 = vmatpush.msra.mxu0 0.0
      %881 = vmatpush.msra.mxu0 0.0
      %882 = vmatpush.msra.mxu0 0.0
      %883 = vmatpush.msra.mxu0 0.0
      %884 = vmatpush.msra.mxu0 0.0
      %885 = vmatpush.msra.mxu0 0.0
      %886 = vmatpush.msra.mxu0 0.0
      %887 = vmatpush.msra.mxu0 %v863
      %888 = vmatmul.f32.gmra.mxu0 %v870
      %v889 = vpop.f32.mrf.mxu0
      %v890 = vadd.f32 0.0, %v889
      %891 = vdwg.mxu0
      %892 = vmatpush.msra.mxu0 0.0
      %893 = vmatpush.msra.mxu0 0.0
      %894 = vmatpush.msra.mxu0 0.0
      %895 = vmatpush.msra.mxu0 0.0
      %896 = vmatpush.msra.mxu0 0.0
      %897 = vmatpush.msra.mxu0 0.0
      %898 = vmatpush.msra.mxu0 0.0
      %899 = vmatpush.msra.mxu0 0.0
      %900 = vmatpush.msra.mxu0 0.0
      %901 = vmatpush.msra.mxu0 0.0
      %902 = vmatpush.msra.mxu0 0.0
      %903 = vmatpush.msra.mxu0 0.0
      %904 = vmatpush.msra.mxu0 0.0
      %905 = vmatpush.msra.mxu0 0.0
      %906 = vmatpush.msra.mxu0 0.0
      %907 = vmatpush.msra.mxu0 %v864
      %908 = vmatmul.f32.gmra.mxu0 %v870
      %v909 = vpop.f32.mrf.mxu0
      %v910 = vadd.f32 0.0, %v909
      %911 = vdwg.mxu0
      %912 = vmatpush.msra.mxu0 0.0
      %913 = vmatpush.msra.mxu0 0.0
      %914 = vmatpush.msra.mxu0 0.0
      %915 = vmatpush.msra.mxu0 0.0
      %916 = vmatpush.msra.mxu0 0.0
      %917 = vmatpush.msra.mxu0 0.0
      %918 = vmatpush.msra.mxu0 0.0
      %919 = vmatpush.msra.mxu0 0.0
      %920 = vmatpush.msra.mxu0 0.0
      %921 = vmatpush.msra.mxu0 0.0
      %922 = vmatpush.msra.mxu0 0.0
      %923 = vmatpush.msra.mxu0 0.0
      %924 = vmatpush.msra.mxu0 0.0
      %925 = vmatpush.msra.mxu0 0.0
      %926 = vmatpush.msra.mxu0 0.0
      %927 = vmatpush.msra.mxu0 %v865
      %928 = vmatmul.f32.gmra.mxu0 %v870
      %v929 = vpop.f32.mrf.mxu0
      %v930 = vadd.f32 0.0, %v929
      %931 = vdwg.mxu0
      %v932 = vadd.f32 %v849, %v890
      %v933 = vadd.f32 %v850, %v910
      %v934 = vadd.f32 %v851, %v930
      %v935 = vrot.slane %v932, 4
      %v936 = vadd.f32 %v932, %v935
      %v937 = vrot.slane %v936, 2
      %v938 = vadd.f32 %v936, %v937
      %v939 = vrot.slane %v938, 1
      %v940 = vadd.f32 %v938, %v939
      %v941 = vrot.slane %v933, 4
      %v942 = vadd.f32 %v933, %v941
      %v943 = vrot.slane %v942, 2
      %v944 = vadd.f32 %v942, %v943
      %v945 = vrot.slane %v944, 1
      %v946 = vadd.f32 %v944, %v945
      %v947 = vrot.slane %v934, 4
      %v948 = vadd.f32 %v934, %v947
      %v949 = vrot.slane %v948, 2
      %v950 = vadd.f32 %v948, %v949
      %v951 = vrot.slane %v950, 1
      %v952 = vadd.f32 %v950, %v951
      %v953 = vrcp.pop 8.0
      %v954 = vmul.f32 8.0, %v953
      %v955 = vsub.f32 1.0, %v954
      %v956 = vmul.f32 %v953, %v955
      %v957 = vadd.f32 %v953, %v956
      %vm958 = vweird.f32 %v953
      %v959 = vsel %vm958, %v953, %v957
      %v960 = vmul.f32 %v940, %v959
      %v961 = vmul.f32 %v946, %v959
      %v962 = vmul.f32 %v952, %v959
      %v963 = vsub.f32 %v932, %v960
      %v964 = vsub.f32 %v933, %v961
      %v965 = vsub.f32 %v934, %v962
      %v966 = vmul.f32 %v963, %v963
      %v967 = vmul.f32 %v964, %v964
      %v968 = vmul.f32 %v965, %v965
      %v969 = vrot.slane %v966, 4
      %v970 = vadd.f32 %v966, %v969
      %v971 = vrot.slane %v970, 2
      %v972 = vadd.f32 %v970, %v971
      %v973 = vrot.slane %v972, 1
      %v974 = vadd.f32 %v972, %v973
      %v975 = vrot.slane %v967, 4
      %v976 = vadd.f32 %v967, %v975
      %v977 = vrot.slane %v976, 2
      %v978 = vadd.f32 %v976, %v977
      %v979 = vrot.slane %v978, 1
      %v980 = vadd.f32 %v978, %v979
      %v981 = vrot.slane %v968, 4
      %v982 = vadd.f32 %v968, %v981
      %v983 = vrot.slane %v982, 2
      %v984 = vadd.f32 %v982, %v983
      %v985 = vrot.slane %v984, 1
      %v986 = vadd.f32 %v984, %v985
      %v987 = vmul.f32 %v974, %v959
      %v988 = vmul.f32 %v980, %v959
      %v989 = vmul.f32 %v986, %v959
      %v990 = vadd.f32 %v987, 1e-06
      %v991 = vadd.f32 %v988, 1e-06
      %v992 = vadd.f32 %v989, 1e-06
      %v993 = vrsqrt.pop %v990
      %v994 = vmul.f32 %v993, %v990
      %v995 = vmul.f32 %v994, %v993
      %v996 = vmul.f32 0.5, %v995
      %v997 = vsub.f32 1.5, %v996
      %v998 = vmul.f32 %v993, %v997
      %vm999 = vweird.f32 %v990
      %vm1000 = vweird.f32 %v993
      %vm1001 = vmor %vm999, %vm1000
      %v1002 = vsel %vm1001, %v993, %v998
      %v1003 = vrsqrt.pop %v991
      %v1004 = vmul.f32 %v1003, %v991
      %v1005 = vmul.f32 %v1004, %v1003
      %v1006 = vmul.f32 0.5, %v1005
      %v1007 = vsub.f32 1.5, %v1006
      %v1008 = vmul.f32 %v1003, %v1007
      %vm1009 = vweird.f32 %v991
      %vm1010 = vweird.f32 %v1003
      %vm1011 = vmor %vm1009, %vm1010
      %v1012 = vsel %vm1011, %v1003, %v1008
      %v1013 = vrsqrt.pop %v992
      %v1014 = vmul.f32 %v1013, %v992
      %v1015 = vmul.f32 %v1014, %v1013
      %v1016 = vmul.f32 0.5, %v1015
      %v1017 = vsub.f32 1.5, %v1016
      %v1018 = vmul.f32 %v1013, %v1017
      %vm1019 = vweird.f32 %v992
      %vm1020 = vweird.f32 %v1013
      %vm1021 = vmor %vm1019, %vm1020
      %v1022 = vsel %vm1021, %v1013, %v1018
      %v1023 = vmul.f32 %v963, %v1002
      %v1024 = vmul.f32 %v964, %v1012
      %v1025 = vmul.f32 %v965, %v1022
      %v1026 = vld [vmem:[%s2] sm:$0xff]
      %1028 = vset.pattern.permute.xlu0 0
      %1029 = vperm.xlu0 %1028, %v1026
      %v1030 = vpop.permute.xlu0 %1029
      %v1032 = vmul.f32 %v1023, %v1030
      %v1033 = vmul.f32 %v1024, %v1030
      %v1034 = vmul.f32 %v1025, %v1030
      %v1035 = vld [vmem:[%s3] sm:$0xff]
      %1037 = vset.pattern.permute.xlu0 0
      %1038 = vperm.xlu0 %1037, %v1035
      %v1039 = vpop.permute.xlu0 %1038
      %v1041 = vadd.f32 %v1032, %v1039
      %v1042 = vadd.f32 %v1033, %v1039
      %v1043 = vadd.f32 %v1034, %v1039
      %v1044 = vmul.f32 %v1041, 0.70710677
      %v1045 = vmul.f32 %v1042, 0.70710677
      %v1046 = vmul.f32 %v1043, 0.70710677
      %v1047 = vand.u32 2147483647, %v1044
      %v1048 = vand.u32 2147483647, %v1045
      %v1049 = vand.u32 2147483647, %v1046
      %v1050 = vmul.f32 %v1047, 0.3275911
      %v1051 = vmul.f32 %v1048, 0.3275911
      %v1052 = vmul.f32 %v1049, 0.3275911
      %v1053 = vadd.f32 %v1050, 1.0
      %v1054 = vadd.f32 %v1051, 1.0
      %v1055 = vadd.f32 %v1052, 1.0
      %v1056 = vrcp.pop %v1053
      %v1057 = vmul.f32 %v1053, %v1056
      %v1058 = vsub.f32 1.0, %v1057
      %v1059 = vmul.f32 %v1056, %v1058
      %v1060 = vadd.f32 %v1056, %v1059
      %vm1061 = vweird.f32 %v1053
      %vm1062 = vweird.f32 %v1056
      %vm1063 = vmor %vm1061, %vm1062
      %v1064 = vsel %vm1063, %v1056, %v1060
      %v1065 = vand.u32 2147483647, %v1053
      %vm1066 = vcmp.eq.f32.partialorder %v1065, 8.507059e+37
      %v1067 = vand.u32 %v1053, 2147483648
      %v1068 = vor.u32 1.1754944e-38, %v1067
      %v1069 = vsel %vm1066, %v1068, %v1064
      %v1070 = vmul.f32 1.0, %v1069
      %v1071 = vrcp.pop %v1054
      %v1072 = vmul.f32 %v1054, %v1071
      %v1073 = vsub.f32 1.0, %v1072
      %v1074 = vmul.f32 %v1071, %v1073
      %v1075 = vadd.f32 %v1071, %v1074
      %vm1076 = vweird.f32 %v1054
      %vm1077 = vweird.f32 %v1071
      %vm1078 = vmor %vm1076, %vm1077
      %v1079 = vsel %vm1078, %v1071, %v1075
      %v1080 = vand.u32 2147483647, %v1054
      %vm1081 = vcmp.eq.f32.partialorder %v1080, 8.507059e+37
      %v1082 = vand.u32 %v1054, 2147483648
      %v1083 = vor.u32 1.1754944e-38, %v1082
      %v1084 = vsel %vm1081, %v1083, %v1079
      %v1085 = vmul.f32 1.0, %v1084
      %v1086 = vrcp.pop %v1055
      %v1087 = vmul.f32 %v1055, %v1086
      %v1088 = vsub.f32 1.0, %v1087
      %v1089 = vmul.f32 %v1086, %v1088
      %v1090 = vadd.f32 %v1086, %v1089
      %vm1091 = vweird.f32 %v1055
      %vm1092 = vweird.f32 %v1086
      %vm1093 = vmor %vm1091, %vm1092
      %v1094 = vsel %vm1093, %v1086, %v1090
      %v1095 = vand.u32 2147483647, %v1055
      %vm1096 = vcmp.eq.f32.partialorder %v1095, 8.507059e+37
      %v1097 = vand.u32 %v1055, 2147483648
      %v1098 = vor.u32 1.1754944e-38, %v1097
      %v1099 = vsel %vm1096, %v1098, %v1094
      %v1100 = vmul.f32 1.0, %v1099
      %v1101 = vmul.f32 %v1070, 1.0614054
      %v1102 = vmul.f32 %v1085, 1.0614054
      %v1103 = vmul.f32 %v1100, 1.0614054
      %v1104 = vsub.f32 %v1101, 1.4531521
      %v1105 = vsub.f32 %v1102, 1.4531521
      %v1106 = vsub.f32 %v1103, 1.4531521
      %v1107 = vmul.f32 %v1104, %v1070
      %v1108 = vmul.f32 %v1105, %v1085
      %v1109 = vmul.f32 %v1106, %v1100
      %v1110 = vadd.f32 %v1107, 1.4214138
      %v1111 = vadd.f32 %v1108, 1.4214138
      %v1112 = vadd.f32 %v1109, 1.4214138
      %v1113 = vmul.f32 %v1110, %v1070
      %v1114 = vmul.f32 %v1111, %v1085
      %v1115 = vmul.f32 %v1112, %v1100
      %v1116 = vsub.f32 %v1113, 0.28449672
      %v1117 = vsub.f32 %v1114, 0.28449672
      %v1118 = vsub.f32 %v1115, 0.28449672
      %v1119 = vmul.f32 %v1116, %v1070
      %v1120 = vmul.f32 %v1117, %v1085
      %v1121 = vmul.f32 %v1118, %v1100
      %v1122 = vadd.f32 %v1119, 0.2548296
      %v1123 = vadd.f32 %v1120, 0.2548296
      %v1124 = vadd.f32 %v1121, 0.2548296
      %v1125 = vmul.f32 %v1122, %v1070
      %v1126 = vmul.f32 %v1123, %v1085
      %v1127 = vmul.f32 %v1124, %v1100
      %v1128 = vsub.f32 0.0, %v1047
      %v1129 = vsub.f32 0.0, %v1048
      %v1130 = vsub.f32 0.0, %v1049
      %v1131 = vmul.f32 %v1128, %v1047
      %v1132 = vmul.f32 %v1129, %v1048
      %v1133 = vmul.f32 %v1130, %v1049
      %v1134 = vmul.f32 %v1131, 1.442695
      %v1135 = vpow.pop %v1134
      %v1136 = vmul.f32 %v1132, 1.442695
      %v1137 = vpow.pop %v1136
      %v1138 = vmul.f32 %v1133, 1.442695
      %v1139 = vpow.pop %v1138
      %v1140 = vmul.f32 %v1125, %v1135
      %v1141 = vmul.f32 %v1126, %v1137
      %v1142 = vmul.f32 %v1127, %v1139
      %v1143 = vsub.f32 1.0, %v1140
      %v1144 = vsub.f32 1.0, %v1141
      %v1145 = vsub.f32 1.0, %v1142
      %vm1146 = vcmp.lt.f32.partialorder %v1044, 0.0
      %vm1147 = vcmp.lt.f32.partialorder %v1045, 0.0
      %vm1148 = vcmp.lt.f32.partialorder %v1046, 0.0
      %v1149 = vsub.f32 0.0, %v1143
      %v1150 = vsub.f32 0.0, %v1144
      %v1151 = vsub.f32 0.0, %v1145
      %v1152 = vsel %vm1146, %v1149, %v1143
      %v1153 = vsel %vm1147, %v1150, %v1144
      %v1154 = vsel %vm1148, %v1151, %v1145
      %v1155 = vmul.f32 %v1041, 0.5
      %v1156 = vmul.f32 %v1042, 0.5
      %v1157 = vmul.f32 %v1043, 0.5
      %v1158 = vadd.f32 %v1152, 1.0
      %v1159 = vadd.f32 %v1153, 1.0
      %v1160 = vadd.f32 %v1154, 1.0
      %v1161 = vmul.f32 %v1155, %v1158
      %v1162 = vmul.f32 %v1156, %v1159
      %v1163 = vmul.f32 %v1157, %v1160
      %1164 = vst [vmem:[%s197] sm:$0xff] %v1161
      %1165 = vst [vmem:[%s197 + $0x8] sm:$0xff] %v1162
      %1166 = vst [vmem:[%s197 + $0x10] sm:$0xff] %v1163
      %p1167 = scmp.lt.s32.totalorder %s15, 1
      %s1168 = scalar_select %p1167, %s15, 1
      %s1169 = smul.addr %s1168, 3
      %s1170 = smul.addr %s1169, 8
      %s1171 = scalar_lea.vmem %s4, %s1170
      // Predicated region
      $region37: #{single_conv_forward.1} parent=35 // pred_check
        %p1172 = pneg %p122
      $region38: #{single_conv_forward.1} parent=35 // pred_check_branch
        %1174 = sbr.rel (%p1172) target = $region40
      $region39: #{single_conv_forward.1} parent=35 // pred_region
        _
      $region40: #{single_conv_forward.1} parent=35 // pred_fallthru
        _
    $region36: #{single_conv_forward.1} parent=5 // pred_fallthru
      _
    %p1175 = scmp.le.s32.totalorder 2, %s10
    // Predicated region
    $region41: #{single_conv_forward.1} parent=5 // pred_check
      %p1176 = pneg %p1175
    $region42: #{single_conv_forward.1} parent=5 // pred_check_branch
      %1178 = sbr.rel (%p1176) target = $region44
    $region43: #{single_conv_forward.1} parent=5 // pred_region
      %s1179 = ssub.s32 %s10, 2
      // Predicated region
      $region45: #{single_conv_forward.1} parent=43 // pred_check
        %p1180 = pneg %p128
      $region46: #{single_conv_forward.1} parent=43 // pred_check_branch
        %1182 = sbr.rel (%p1180) target = $region48
      $region47: #{single_conv_forward.1} parent=43 // pred_region
        %p1183 = scmp.lt.s32.totalorder %s16, 1
        %s1184 = scalar_select %p1183, %s16, 1
        %s1185 = smul.addr %s1184, 3
        %s1186 = smul.addr %s1185, 8
        %s1187 = scalar_lea.vmem %s4, %s1186
      $region48: #{single_conv_forward.1} parent=43 // pred_fallthru
        _
    $region44: #{single_conv_forward.1} parent=5 // pred_fallthru
      _
  $region6: #{single_conv_forward.1} parent=0 // loop_footer
    %s14 = sadd.s32 1, %s10
  $region7: #{single_conv_forward.1} parent=0 // loop_footer_branch
    %9 = sbr.rel target = $region3
  $region8: #{single_conv_forward.1} parent=0 // loop_exit
    _

</llo_original>
